<compile_context>
chip_gen: v7x
topology: tpu7x:2x2x1
jax: 0.10.0
libtpu: 0.0.40
codegen_flags: <defaults>
</compile_context>

<pallas_src>
import functools

import jax
import jax.numpy as jnp
from jax import lax
from jax.experimental import pallas as pl
from jax.experimental.pallas import tpu as pltpu


def _dropblock3d_kernel(x_ref, m_ref, o_ref, pad_ref, *, block_size, W):
    # x_ref : (1, C, D, HW) f32   one batch sample, HW = H*W (lane axis)
    # m_ref : (1, C, D, HW) int8  Bernoulli mask (values 0/1)
    # o_ref : (1, C, D, HW) f32
    # pad_ref: (C, D + 2p, HW + 2p*W) f32 scratch (zero border, live interior)
    _, C, D, HW = x_ref.shape
    bs = block_size
    p = bs // 2
    q = p * W                                      # lane-axis padding width
    offs = [k - p for k in range(bs) if k != p]    # non-zero pooling offsets

    # ---- zero only the scratch border (interior fully re-written below) ----
    if p > 0:
        zrow = jnp.zeros((C, p, HW), jnp.float32)
        pad_ref[:, pl.ds(0, p), pl.ds(q, HW)] = zrow
        pad_ref[:, pl.ds(p + D, p), pl.ds(q, HW)] = zrow
    if q > 0:
        zcol = jnp.zeros((C, D, q), jnp.float32)
        pad_ref[:, pl.ds(p, D), pl.ds(0, q)] = zcol
        pad_ref[:, pl.ds(p, D), pl.ds(q + HW, q)] = zcol

    m = m_ref[0].astype(jnp.float32)               # (C, D, HW)

    # w-coordinate of every lane (for W-direction window validity masks)
    lane = lax.broadcasted_iota(jnp.int32, (1, 1, HW), 2)
    w_pos = (lane & (W - 1)) if (W & (W - 1)) == 0 else lax.rem(lane, W)

    # ---- pass 1: W offsets (lane shifts by o, masked at W-block borders) ---
    pad_ref[:, pl.ds(p, D), pl.ds(q, HW)] = m
    pooled = m                                     # offset 0 term
    for o in offs:
        shifted = pad_ref[:, pl.ds(p, D), pl.ds(q + o, HW)]
        valid = ((w_pos + o >= 0) & (w_pos + o < W)).astype(jnp.float32)
        pooled = jnp.maximum(pooled, shifted * valid)  # mask >= 0, 0 is neutral

    # ---- pass 2: H offsets (lane shifts by o*W; zero-fill border is exact) --
    pad_ref[:, pl.ds(p, D), pl.ds(q, HW)] = pooled
    acc = pooled
    for o in offs:
        acc = jnp.maximum(acc, pad_ref[:, pl.ds(p, D), pl.ds(q + o * W, HW)])
    pooled = acc

    # ---- pass 3: D offsets (sublane shifts by o; zero-fill border is exact) -
    pad_ref[:, pl.ds(p, D), pl.ds(q, HW)] = pooled
    acc = pooled
    for o in offs:
        acc = jnp.maximum(acc, pad_ref[:, pl.ds(p + o, D), pl.ds(q, HW)])
    pooled = acc

    block_mask = 1.0 - pooled                      # (C, D, HW)

    # normalize_factor = numel / N / sum(block_mask)   (per sample)
    # NOTE: sum==0 (everything dropped) gives inf/NaN, same as the PyTorch ref.
    total = jnp.float32(C * D * HW)
    s = jnp.sum(block_mask)
    s_v = jnp.zeros((1, 1), jnp.float32) + s       # lift to 2-D for EUP recip
    inv = pl.reciprocal(s_v, approx=True)          # EUP slot (free next to VPU)
    inv = inv * (2.0 - s_v * inv)                  # Newton step 1
    inv = inv * (2.0 - s_v * inv)                  # Newton step 2 -> f32-exact
    norm = total * jnp.sum(inv)

    o_ref[0] = x_ref[0] * block_mask * norm


def dropblock3d_pallas(x, mask_i8, block_size):
    """x: (N, C, D, H, W) float32; mask_i8: same shape, int8 Bernoulli draws."""
    N, C, D, H, W = x.shape
    HW = H * W
    p = block_size // 2
    q = p * W

    # Lane-dense view: (N, C, D, H*W); the reshapes are free (row-major).
    x4 = x.reshape(N, C, D, HW)
    m4 = mask_i8.reshape(N, C, D, HW)

    kernel = functools.partial(_dropblock3d_kernel, block_size=block_size, W=W)
    spec = pl.BlockSpec((1, C, D, HW), lambda n: (n, 0, 0, 0))

    numel = N * C * D * HW
    cost = pl.CostEstimate(
        flops=(3 * block_size + 3) * numel,        # separable pool + normalize
        transcendentals=N,                         # one reciprocal per sample
        bytes_accessed=numel * (4 + 1 + 4),        # x(f32) + mask(i8) + out(f32)
    )

    # VMEM budget: double-buffered x/mask/out tiles + scratch + value temps.
    # NOTE: for very large C*D*H*W samples (v7x has only 64 MiB VMEM) this
    # whole-sample-resident design should be tiled over C with a two-pass
    # (pool + partial sums, then normalize) structure.
    tile_f32 = C * D * HW * 4
    tile_i8 = C * D * HW
    scratch_bytes = C * (D + 2 * p) * (HW + 2 * q) * 4
    vmem_bytes = (2 * (2 * tile_f32 + tile_i8) + scratch_bytes
                  + 8 * tile_f32 + (8 << 20))
    vmem_bytes = min(vmem_bytes, 64 * 1024 * 1024)

    out4 = pl.pallas_call(
        kernel,
        out_shape=jax.ShapeDtypeStruct((N, C, D, HW), x.dtype),
        grid_spec=pltpu.PrefetchScalarGridSpec(
            num_scalar_prefetch=0,
            grid=(N,),
            in_specs=[spec, spec],
            out_specs=spec,
            scratch_shapes=[
                pltpu.VMEM((C, D + 2 * p, HW + 2 * q), jnp.float32)
            ],
        ),
        compiler_params=pltpu.CompilerParams(
            dimension_semantics=("parallel",),
            vmem_limit_bytes=int(vmem_bytes),
        ),
        cost_estimate=cost,
    )(x4, m4)
    return out4.reshape(N, C, D, H, W)


def dropblock3d_forward(x, *, drop_prob, block_size, key, training=True):
    """Forward pass matching DropBlock3D.forward (training mode)."""
    if not training or drop_prob == 0.0:
        return x
    sh = x.shape[2]                                # depth, as in the module
    gamma = drop_prob / (block_size ** 2)
    gamma *= (sh / (sh - block_size + 1)) ** 3
    mask = (jax.random.uniform(key, x.shape) < gamma).astype(jnp.int8)
    return dropblock3d_pallas(x, mask, block_size)


def _dropblock3d_ref(x, mask, block_size):
    """Pure-JAX reference mirroring the PyTorch code (for verification)."""
    p = block_size // 2
    pooled = lax.reduce_window(
        mask, -jnp.inf, lax.max,
        window_dimensions=(1, 1, block_size, block_size, block_size),
        window_strides=(1, 1, 1, 1, 1),
        padding=((0, 0), (0, 0), (p, p), (p, p), (p, p)))
    if block_size % 2 == 0:
        pooled = pooled[:, :, :-1, :-1, :-1]
    block_mask = 1.0 - pooled
    n = x.shape[0]
    total = block_mask.size / n
    s = jnp.sum(block_mask, axis=(1, 2, 3, 4))
    norm = (total / s).reshape(n, 1, 1, 1, 1)
    return x * block_mask * norm


if __name__ == "__main__":
    # Small, deterministic shapes (N, C, D, H, W); HW = 128 -> lane-dense.
    N, C, D, H, W = 2, 4, 8, 16, 8

    key = jax.random.PRNGKey(0)
    kx, km = jax.random.split(key)
    x = jax.random.normal(kx, (N, C, D, H, W), dtype=jnp.float32)

    for drop_prob, block_size in ((0.25, 3), (0.10, 4)):
        # Build the Bernoulli mask exactly as the module does (gamma from depth).
        gamma = drop_prob / (block_size ** 2) * (D / (D - block_size + 1)) ** 3
        mask = (jax.random.uniform(km, x.shape) < gamma).astype(jnp.int8)

        out = jax.block_until_ready(dropblock3d_pallas(x, mask, block_size))
        ref = _dropblock3d_ref(x, mask.astype(jnp.float32), block_size)

        assert out.shape == x.shape and out.dtype == x.dtype
        assert jnp.allclose(out, ref, atol=1e-5, rtol=1e-5), (
            f"mismatch vs reference (block_size={block_size})")

    print("KERNEL_OK")
</pallas_src>

<mosaic_0001>
module attributes {stable_mosaic.version = 11 : i64} {
  func.func @_dropblock3d_kernel(%arg0: i32, %arg1: memref<1x4x8x128xf32, #tpu.memory_space<vmem>>, %arg2: memref<1x4x8x128xi8, #tpu.memory_space<vmem>>, %arg3: memref<1x4x8x128xf32, #tpu.memory_space<vmem>>, %arg4: memref<4x10x144xf32, #tpu.memory_space<vmem>>) attributes {dimension_semantics = [#tpu.dimension_semantics<parallel>], iteration_bounds = array<i64: 2>, scalar_prefetch = 0 : i64, scratch_operands = 1 : i64, tpu.core_type = #tpu.core_type<tc>, window_params = [{transform_indices = @transform_0, window_bounds = array<i64: 1, 4, 8, 128>}, {transform_indices = @transform_1, window_bounds = array<i64: 1, 4, 8, 128>}, {transform_indices = @transform_2, window_bounds = array<i64: 1, 4, 8, 128>}]} {
    %cst = arith.constant 0.000000e+00 : f32
    %0 = vector.broadcast %cst : f32 to vector<4x1x128xf32>
    %c0 = arith.constant 0 : index
    %c0_0 = arith.constant 0 : index
    %c8 = arith.constant 8 : index
    %1 = vector.load %arg4[%c0, %c0_0, %c8] : memref<4x10x144xf32, #tpu.memory_space<vmem>>, vector<4x1x128xf32>
    tpu.vector_store %arg4[%c0, %c0_0, %c8], %0 {strides = array<i32>} : memref<4x10x144xf32, #tpu.memory_space<vmem>>, vector<4x1x128xf32>,
    %c0_1 = arith.constant 0 : index
    %c9 = arith.constant 9 : index
    %c8_2 = arith.constant 8 : index
    %2 = vector.load %arg4[%c0_1, %c9, %c8_2] : memref<4x10x144xf32, #tpu.memory_space<vmem>>, vector<4x1x128xf32>
    tpu.vector_store %arg4[%c0_1, %c9, %c8_2], %0 {strides = array<i32>} : memref<4x10x144xf32, #tpu.memory_space<vmem>>, vector<4x1x128xf32>,
    %cst_3 = arith.constant 0.000000e+00 : f32
    %3 = vector.broadcast %cst_3 : f32 to vector<4x8x8xf32>
    %c0_4 = arith.constant 0 : index
    %c1 = arith.constant 1 : index
    %c0_5 = arith.constant 0 : index
    %4 = vector.load %arg4[%c0_4, %c1, %c0_5] : memref<4x10x144xf32, #tpu.memory_space<vmem>>, vector<4x8x8xf32>
    tpu.vector_store %arg4[%c0_4, %c1, %c0_5], %3 {strides = array<i32>} : memref<4x10x144xf32, #tpu.memory_space<vmem>>, vector<4x8x8xf32>,
    %c0_6 = arith.constant 0 : index
    %c1_7 = arith.constant 1 : index
    %c136 = arith.constant 136 : index
    %5 = vector.load %arg4[%c0_6, %c1_7, %c136] : memref<4x10x144xf32, #tpu.memory_space<vmem>>, vector<4x8x8xf32>
    tpu.vector_store %arg4[%c0_6, %c1_7, %c136], %3 {strides = array<i32>} : memref<4x10x144xf32, #tpu.memory_space<vmem>>, vector<4x8x8xf32>,
    %c0_8 = arith.constant 0 : index
    %c0_9 = arith.constant 0 : index
    %c0_10 = arith.constant 0 : index
    %c0_11 = arith.constant 0 : index
    %6 = vector.load %arg2[%c0_8, %c0_9, %c0_10, %c0_11] : memref<1x4x8x128xi8, #tpu.memory_space<vmem>>, vector<1x4x8x128xi8>
    %7 = vector.shape_cast %6 : vector<1x4x8x128xi8> to vector<4x8x128xi8>
    %8 = arith.sitofp %7 : vector<4x8x128xi8> to vector<4x8x128xf32>
    %9 = tpu.iota {dimensions = array<i32: 2>} : vector<1x1x128xi32>
    %c7_i32 = arith.constant 7 : i32
    %10 = vector.broadcast %c7_i32 : i32 to vector<1x1x128xi32>
    %11 = arith.andi %9, %10 : vector<1x1x128xi32>
    %c0_12 = arith.constant 0 : index
    %c1_13 = arith.constant 1 : index
    %c8_14 = arith.constant 8 : index
    %12 = vector.load %arg4[%c0_12, %c1_13, %c8_14] : memref<4x10x144xf32, #tpu.memory_space<vmem>>, vector<4x8x128xf32>
    tpu.vector_store %arg4[%c0_12, %c1_13, %c8_14], %8 {strides = array<i32>} : memref<4x10x144xf32, #tpu.memory_space<vmem>>, vector<4x8x128xf32>,
    %c0_15 = arith.constant 0 : index
    %c1_16 = arith.constant 1 : index
    %c7 = arith.constant 7 : index
    %13 = vector.load %arg4[%c0_15, %c1_16, %c7] : memref<4x10x144xf32, #tpu.memory_space<vmem>>, vector<4x8x128xf32>
    %c-1_i32 = arith.constant -1 : i32
    %14 = vector.broadcast %c-1_i32 : i32 to vector<1x1x128xi32>
    %15 = arith.addi %11, %14 : vector<1x1x128xi32>
    %c0_i32 = arith.constant 0 : i32
    %16 = vector.broadcast %c0_i32 : i32 to vector<1x1x128xi32>
    %17 = arith.cmpi sge, %15, %16 : vector<1x1x128xi32>
    %c-1_i32_17 = arith.constant -1 : i32
    %18 = vector.broadcast %c-1_i32_17 : i32 to vector<1x1x128xi32>
    %19 = arith.addi %11, %18 : vector<1x1x128xi32>
    %c8_i32 = arith.constant 8 : i32
    %20 = vector.broadcast %c8_i32 : i32 to vector<1x1x128xi32>
    %21 = arith.cmpi slt, %19, %20 : vector<1x1x128xi32>
    %22 = arith.andi %17, %21 : vector<1x1x128xi1>
    %23 = arith.extui %22 : vector<1x1x128xi1> to vector<1x1x128xi32>
    %24 = arith.sitofp %23 : vector<1x1x128xi32> to vector<1x1x128xf32>
    %25 = vector.broadcast %24 : vector<1x1x128xf32> to vector<4x8x128xf32>
    %26 = arith.mulf %13, %25 : vector<4x8x128xf32>
    %27 = arith.maximumf %8, %26 : vector<4x8x128xf32>
    %c0_18 = arith.constant 0 : index
    %c1_19 = arith.constant 1 : index
    %c9_20 = arith.constant 9 : index
    %28 = vector.load %arg4[%c0_18, %c1_19, %c9_20] : memref<4x10x144xf32, #tpu.memory_space<vmem>>, vector<4x8x128xf32>
    %c1_i32 = arith.constant 1 : i32
    %29 = vector.broadcast %c1_i32 : i32 to vector<1x1x128xi32>
    %30 = arith.addi %11, %29 : vector<1x1x128xi32>
    %c0_i32_21 = arith.constant 0 : i32
    %31 = vector.broadcast %c0_i32_21 : i32 to vector<1x1x128xi32>
    %32 = arith.cmpi sge, %30, %31 : vector<1x1x128xi32>
    %c1_i32_22 = arith.constant 1 : i32
    %33 = vector.broadcast %c1_i32_22 : i32 to vector<1x1x128xi32>
    %34 = arith.addi %11, %33 : vector<1x1x128xi32>
    %c8_i32_23 = arith.constant 8 : i32
    %35 = vector.broadcast %c8_i32_23 : i32 to vector<1x1x128xi32>
    %36 = arith.cmpi slt, %34, %35 : vector<1x1x128xi32>
    %37 = arith.andi %32, %36 : vector<1x1x128xi1>
    %38 = arith.extui %37 : vector<1x1x128xi1> to vector<1x1x128xi32>
    %39 = arith.sitofp %38 : vector<1x1x128xi32> to vector<1x1x128xf32>
    %40 = vector.broadcast %39 : vector<1x1x128xf32> to vector<4x8x128xf32>
    %41 = arith.mulf %28, %40 : vector<4x8x128xf32>
    %42 = arith.maximumf %27, %41 : vector<4x8x128xf32>
    %c0_24 = arith.constant 0 : index
    %c1_25 = arith.constant 1 : index
    %c8_26 = arith.constant 8 : index
    %43 = vector.load %arg4[%c0_24, %c1_25, %c8_26] : memref<4x10x144xf32, #tpu.memory_space<vmem>>, vector<4x8x128xf32>
    tpu.vector_store %arg4[%c0_24, %c1_25, %c8_26], %42 {strides = array<i32>} : memref<4x10x144xf32, #tpu.memory_space<vmem>>, vector<4x8x128xf32>,
    %c0_27 = arith.constant 0 : index
    %c1_28 = arith.constant 1 : index
    %c0_29 = arith.constant 0 : index
    %44 = vector.load %arg4[%c0_27, %c1_28, %c0_29] : memref<4x10x144xf32, #tpu.memory_space<vmem>>, vector<4x8x128xf32>
    %45 = arith.maximumf %42, %44 : vector<4x8x128xf32>
    %c0_30 = arith.constant 0 : index
    %c1_31 = arith.constant 1 : index
    %c16 = arith.constant 16 : index
    %46 = vector.load %arg4[%c0_30, %c1_31, %c16] : memref<4x10x144xf32, #tpu.memory_space<vmem>>, vector<4x8x128xf32>
    %47 = arith.maximumf %45, %46 : vector<4x8x128xf32>
    %c0_32 = arith.constant 0 : index
    %c1_33 = arith.constant 1 : index
    %c8_34 = arith.constant 8 : index
    %48 = vector.load %arg4[%c0_32, %c1_33, %c8_34] : memref<4x10x144xf32, #tpu.memory_space<vmem>>, vector<4x8x128xf32>
    tpu.vector_store %arg4[%c0_32, %c1_33, %c8_34], %47 {strides = array<i32>} : memref<4x10x144xf32, #tpu.memory_space<vmem>>, vector<4x8x128xf32>,
    %c0_35 = arith.constant 0 : index
    %c0_36 = arith.constant 0 : index
    %c8_37 = arith.constant 8 : index
    %49 = vector.load %arg4[%c0_35, %c0_36, %c8_37] : memref<4x10x144xf32, #tpu.memory_space<vmem>>, vector<4x8x128xf32>
    %50 = arith.maximumf %47, %49 : vector<4x8x128xf32>
    %c0_38 = arith.constant 0 : index
    %c2 = arith.constant 2 : index
    %c8_39 = arith.constant 8 : index
    %51 = vector.load %arg4[%c0_38, %c2, %c8_39] : memref<4x10x144xf32, #tpu.memory_space<vmem>>, vector<4x8x128xf32>
    %52 = arith.maximumf %50, %51 : vector<4x8x128xf32>
    %cst_40 = arith.constant 1.000000e+00 : f32
    %53 = vector.broadcast %cst_40 : f32 to vector<4x8x128xf32>
    %54 = arith.subf %53, %52 : vector<4x8x128xf32>
    %55 = vector.shape_cast %54 : vector<4x8x128xf32> to vector<1x4x8x128xf32>
    %cst_41 = arith.constant dense<0.000000e+00> : vector<1xf32>
    %56 = vector.multi_reduction <add>, %55, %cst_41 [1, 2, 3] : vector<1x4x8x128xf32> to vector<1xf32>
    %57 = vector.shape_cast %56 : vector<1xf32> to vector<1x1x1x1xf32>
    %58 = vector.extract %57[0, 0, 0, 0] : f32 from vector<1x1x1x1xf32>
    %cst_42 = arith.constant 0.000000e+00 : f32
    %59 = vector.broadcast %cst_42 : f32 to vector<1x1xf32>
    %60 = vector.broadcast %58 : f32 to vector<1x1xf32>
    %61 = arith.addf %59, %60 : vector<1x1xf32>
    %62 = tpu.reciprocal %61 {approx = true} : vector<1x1xf32> -> vector<1x1xf32>
    %63 = arith.mulf %61, %62 : vector<1x1xf32>
    %cst_43 = arith.constant 2.000000e+00 : f32
    %64 = vector.broadcast %cst_43 : f32 to vector<1x1xf32>
    %65 = arith.subf %64, %63 : vector<1x1xf32>
    %66 = arith.mulf %62, %65 : vector<1x1xf32>
    %67 = arith.mulf %61, %66 : vector<1x1xf32>
    %cst_44 = arith.constant 2.000000e+00 : f32
    %68 = vector.broadcast %cst_44 : f32 to vector<1x1xf32>
    %69 = arith.subf %68, %67 : vector<1x1xf32>
    %70 = arith.mulf %66, %69 : vector<1x1xf32>
    %71 = vector.shape_cast %70 : vector<1x1xf32> to vector<1x1x1xf32>
    %cst_45 = arith.constant dense<0.000000e+00> : vector<1xf32>
    %72 = vector.multi_reduction <add>, %71, %cst_45 [1, 2] : vector<1x1x1xf32> to vector<1xf32>
    %73 = vector.shape_cast %72 : vector<1xf32> to vector<1x1x1xf32>
    %74 = vector.extract %73[0, 0, 0] : f32 from vector<1x1x1xf32>
    %cst_46 = arith.constant 4.096000e+03 : f32
    %75 = arith.mulf %cst_46, %74 : f32
    %c0_47 = arith.constant 0 : index
    %c0_48 = arith.constant 0 : index
    %c0_49 = arith.constant 0 : index
    %c0_50 = arith.constant 0 : index
    %76 = vector.load %arg1[%c0_47, %c0_48, %c0_49, %c0_50] : memref<1x4x8x128xf32, #tpu.memory_space<vmem>>, vector<1x4x8x128xf32>
    %77 = vector.shape_cast %76 : vector<1x4x8x128xf32> to vector<4x8x128xf32>
    %78 = arith.mulf %77, %54 : vector<4x8x128xf32>
    %79 = vector.broadcast %75 : f32 to vector<4x8x128xf32>
    %80 = arith.mulf %78, %79 : vector<4x8x128xf32>
    %c0_51 = arith.constant 0 : index
    %c0_52 = arith.constant 0 : index
    %c0_53 = arith.constant 0 : index
    %c0_54 = arith.constant 0 : index
    %81 = vector.load %arg3[%c0_51, %c0_52, %c0_53, %c0_54] : memref<1x4x8x128xf32, #tpu.memory_space<vmem>>, vector<1x4x8x128xf32>
    %82 = vector.shape_cast %81 : vector<1x4x8x128xf32> to vector<4x8x128xf32>
    %83 = vector.shape_cast %80 : vector<4x8x128xf32> to vector<1x4x8x128xf32>
    tpu.vector_store %arg3[%c0_51, %c0_52, %c0_53, %c0_54], %83 {strides = array<i32>} : memref<1x4x8x128xf32, #tpu.memory_space<vmem>>, vector<1x4x8x128xf32>,
    return
  }
  func.func @transform_0(%arg0: i32) -> (i32, i32, i32, i32) {
    %c0_i32 = arith.constant 0 : i32
    %c0_i32_0 = arith.constant 0 : i32
    %c0_i32_1 = arith.constant 0 : i32
    %c0_i32_2 = arith.constant 0 : i32
    return %arg0, %c0_i32, %c0_i32_0, %c0_i32_1 : i32, i32, i32, i32
  }
  func.func @transform_1(%arg0: i32) -> (i32, i32, i32, i32) {
    %c0_i32 = arith.constant 0 : i32
    %c0_i32_0 = arith.constant 0 : i32
    %c0_i32_1 = arith.constant 0 : i32
    %c0_i32_2 = arith.constant 0 : i32
    return %arg0, %c0_i32, %c0_i32_0, %c0_i32_1 : i32, i32, i32, i32
  }
  func.func @transform_2(%arg0: i32) -> (i32, i32, i32, i32) {
    %c0_i32 = arith.constant 0 : i32
    %c0_i32_0 = arith.constant 0 : i32
    %c0_i32_1 = arith.constant 0 : i32
    %c0_i32_2 = arith.constant 0 : i32
    return %arg0, %c0_i32, %c0_i32_0, %c0_i32_1 : i32, i32, i32, i32
  }
}

</mosaic_0001>

<llo_original>
// kernel: tpu_custom_call.1
$region0: #{tpu_custom_call.1}
  #allocation0 [shape = 'u32[]', space=smem, size = 0x4, offset = 0x4, fixed_abs, tag = 'smem constant byte address 0x4 - core index']
  #allocation1 [shape = 'u32[144,128]{1,0:T(1,128)}', space=vmem, size = 0x12000, scoped, tag = 'internal scratch']
  #allocation2 [shape = 'f32[4,10,144]{2,1,0:T(8,128)}', space=vmem, size = 0x10000, scoped, tag = 'scratch operand']
  %s0 = inlined_call_operand.hbm [shape: f32[2,4,8,128], index: 0, kind: input, shape index: {}]
  %s1 = inlined_call_operand.hbm [shape: s8[2,4,8,128], index: 1, kind: input, shape index: {}]
  %s2 = inlined_call_operand.hbm [shape: f32[2,4,8,128], index: 2, kind: output, shape index: {}]
  %s3 = sld [smem:[#allocation0]]
  $region49: #{tpu_custom_call.1} parent=0
    _
  %s5 = ssub.s32 1, %s3
  %s6 = scalar_select 0, %s5, %s3
  $region1: #{tpu_custom_call.1} parent=0
    #allocation3 [shape = 'u8[32768]{0}', space=vmem, size = 0x8000, scoped, tag = 'input window, operand 0']
    #allocation4 [shape = 's32[2]{0}', space=sflag, size = 0x8, scoped, tag = 'scoped memory for tpu_custom_call.1']
    #allocation5 [shape = 's32[2]{0}', space=sflag, size = 0x8, scoped, tag = 'scoped memory for tpu_custom_call.1']
    #allocation6 [shape = 'u8[8192]{0}', space=vmem, size = 0x2000, scoped, tag = 'input window, operand 1']
    #allocation7 [shape = 's32[2]{0}', space=sflag, size = 0x8, scoped, tag = 'scoped memory for tpu_custom_call.1']
    #allocation8 [shape = 'u8[32768]{0}', space=vmem, size = 0x8000, scoped, tag = 'output window, operand 0']
    %7 = vsyncpa [#allocation4], 0
    %s8 = scalar_lea.sflag [#allocation4], 1
    %9 = vsyncpa %s8, 0
    %10 = vsyncpa [#allocation7], 0
    %s11 = scalar_lea.sflag [#allocation7], 1
    %12 = vsyncpa %s11, 0
    %13 = vsyncpa [#allocation5], 0
    %s14 = scalar_lea.sflag [#allocation5], 1
    %15 = vsyncpa %s14, 0
    loop: start=0, step=1, limit=4
    $region2: #{tpu_custom_call.1} parent=1 // loop_pre_header
      _
    $region3: #{tpu_custom_call.1} parent=1 // loop_header
      %s17 = sphi 0, %s21
      %p18 = scmp.ge.s32.totalorder %s17, 4
      %s27 = sphi 0, %s29
      %s30 = sphi 0, %s27
      %s31 = sphi 0, %s30
      %s47 = sphi 0, %s31
      %s53 = sphi 0, %s55
      %s56 = sphi 0, %s53
      %s57 = sphi 0, %s56
      %s73 = sphi 0, %s57
      %s79 = sphi 0, %s81
      %s82 = sphi 0, %s79
      %s83 = sphi 0, %s82
      %s99 = sphi 0, %s83
    $region4: #{tpu_custom_call.1} parent=1 // loop_header_branch
      %20 = sbr.rel (%p18) target = $region8
    $region5: #{tpu_custom_call.1} parent=1 // loop_body
      %s22 = ssub.s32 %s17, 1
      %s23 = ssub.s32 %s17, 2
      %s24 = sadd.s32 %s17, 1
      %s25 = ssub.s32 %s17, %s24
      %p26 = scmp.eq.s32.totalorder %s25, 0
      %s28 = sadd.s32 %s27, 1
      %s29 = scalar_select %p26, %s27, %s28
      %p32 = pneg %p26
      %p33 = scmp.eq.s32.totalorder %s17, 1
      %p34 = por %p32, %p33
      %p35 = scmp.ne.s32.totalorder %s27, %s30
      %p36 = scmp.eq.s32.totalorder %s17, 0
      %p37 = por %p35, %p36
      %p38 = scmp.ne.s32.totalorder %s27, %s30
      %p39 = scmp.eq.s32.totalorder %s22, 1
      %p40 = por %p38, %p39
      %p41 = scmp.ne.s32.totalorder %s30, %s31
      %p42 = scmp.eq.s32.totalorder %s22, 0
      %p43 = por %p41, %p42
      %p44 = scmp.ne.s32.totalorder %s30, %s31
      %p45 = scmp.eq.s32.totalorder %s23, 1
      %p46 = por %p44, %p45
      %p48 = scmp.ne.s32.totalorder %s31, %s47
      %p49 = scmp.eq.s32.totalorder %s23, 0
      %p50 = por %p48, %p49
      %s51 = ssub.s32 %s17, %s24
      %p52 = scmp.eq.s32.totalorder %s51, 0
      %s54 = sadd.s32 %s53, 1
      %s55 = scalar_select %p52, %s53, %s54
      %p58 = pneg %p52
      %p59 = scmp.eq.s32.totalorder %s17, 1
      %p60 = por %p58, %p59
      %p61 = scmp.ne.s32.totalorder %s53, %s56
      %p62 = scmp.eq.s32.totalorder %s17, 0
      %p63 = por %p61, %p62
      %p64 = scmp.ne.s32.totalorder %s53, %s56
      %p65 = scmp.eq.s32.totalorder %s22, 1
      %p66 = por %p64, %p65
      %p67 = scmp.ne.s32.totalorder %s56, %s57
      %p68 = scmp.eq.s32.totalorder %s22, 0
      %p69 = por %p67, %p68
      %p70 = scmp.ne.s32.totalorder %s56, %s57
      %p71 = scmp.eq.s32.totalorder %s23, 1
      %p72 = por %p70, %p71
      %p74 = scmp.ne.s32.totalorder %s57, %s73
      %p75 = scmp.eq.s32.totalorder %s23, 0
      %p76 = por %p74, %p75
      %s77 = ssub.s32 %s17, %s24
      %p78 = scmp.eq.s32.totalorder %s77, 0
      %s80 = sadd.s32 %s79, 1
      %s81 = scalar_select %p78, %s79, %s80
      %p84 = pneg %p78
      %p85 = scmp.eq.s32.totalorder %s17, 1
      %p86 = por %p84, %p85
      %p87 = scmp.ne.s32.totalorder %s79, %s82
      %p88 = scmp.eq.s32.totalorder %s17, 0
      %p89 = por %p87, %p88
      %p90 = scmp.ne.s32.totalorder %s79, %s82
      %p91 = scmp.eq.s32.totalorder %s22, 1
      %p92 = por %p90, %p91
      %p93 = scmp.ne.s32.totalorder %s82, %s83
      %p94 = scmp.eq.s32.totalorder %s22, 0
      %p95 = por %p93, %p94
      %p96 = scmp.ne.s32.totalorder %s82, %s83
      %p97 = scmp.eq.s32.totalorder %s23, 1
      %p98 = por %p96, %p97
      %p100 = scmp.ne.s32.totalorder %s83, %s99
      %p101 = scmp.eq.s32.totalorder %s23, 0
      %p102 = por %p100, %p101
      %p103 = scmp.le.s32.totalorder 1, %s17
      %p104 = scmp.lt.s32.totalorder %s17, 3
      %p105 = pnand %p103, %p104
      %p106 = pneg %p105
      // Predicated region
      $region9: #{tpu_custom_call.1} parent=5 // pred_check
        _
      $region10: #{tpu_custom_call.1} parent=5 // pred_check_branch
        %108 = sbr.rel (%p105) target = $region12
      $region11: #{tpu_custom_call.1} parent=5 // pred_region
        %s109 = ssub.s32 %s17, 1
      $region12: #{tpu_custom_call.1} parent=5 // pred_fallthru
        _
      %p110 = scmp.lt.s32.totalorder %s17, 2
      // Predicated region
      $region13: #{tpu_custom_call.1} parent=5 // pred_check
        %p111 = pneg %p110
      $region14: #{tpu_custom_call.1} parent=5 // pred_check_branch
        %113 = sbr.rel (%p111) target = $region16
      $region15: #{tpu_custom_call.1} parent=5 // pred_region
        // Predicated region
        $region17: #{tpu_custom_call.1} parent=15 // pred_check
          %p114 = pneg %p37
        $region18: #{tpu_custom_call.1} parent=15 // pred_check_branch
          %116 = sbr.rel (%p114) target = $region20
        $region19: #{tpu_custom_call.1} parent=15 // pred_region
          %s117 = sand.u32 %s27, 1
          %s118 = scalar_lea.sflag [#allocation4], %s117
          %s119 = sand.u32 %s27, 1
          %s120 = smul.addr %s119, 32
          %s121 = scalar_lea.vmem [#allocation3], %s120
          %s123 = ssub.s32 512, 512
          %124 = vsyncadd %s118, %s123
          %s125 = smul.addr %s17, 4
          %s126 = smul.addr %s125, 128
          %s127 = scalar_lea.hbm %s0, %s126
          %s128 = sshll.u32 %s121, 4
          %s129 = int_to_ptr.vmem [resolvable:$true] %s128
          %134 = dma.hbm_to_vmem [thread:$0]  %s127, 512, %s129, %s118, 128, 128, 8
        $region20: #{tpu_custom_call.1} parent=15 // pred_fallthru
          _
        // Predicated region
        $region21: #{tpu_custom_call.1} parent=15 // pred_check
          %p135 = pneg %p63
        $region22: #{tpu_custom_call.1} parent=15 // pred_check_branch
          %137 = sbr.rel (%p135) target = $region24
        $region23: #{tpu_custom_call.1} parent=15 // pred_region
          %s138 = sand.u32 %s53, 1
          %s139 = scalar_lea.sflag [#allocation7], %s138
          %s140 = sand.u32 %s53, 1
          %s141 = smul.addr %s140, 8
          %s142 = scalar_lea.vmem [#allocation6], %s141
          %s144 = ssub.s32 128, 128
          %145 = vsyncadd %s139, %s144
          %s146 = smul.addr %s17, 4
          %s147 = smul.addr %s146, 32
          %s148 = scalar_lea.hbm %s1, %s147
          %s149 = sshll.u32 %s142, 4
          %s150 = int_to_ptr.vmem [resolvable:$true] %s149
          %155 = dma.hbm_to_vmem [thread:$0]  %s148, 128, %s150, %s139, 32, 32, 2
        $region24: #{tpu_custom_call.1} parent=15 // pred_fallthru
          _
      $region16: #{tpu_custom_call.1} parent=5 // pred_fallthru
        _
      %p156 = scmp.le.s32.totalorder 1, %s17
      %p157 = scmp.lt.s32.totalorder %s17, 3
      %p158 = pnand %p156, %p157
      %p159 = pneg %p158
      // Predicated region
      $region25: #{tpu_custom_call.1} parent=5 // pred_check
        _
      $region26: #{tpu_custom_call.1} parent=5 // pred_check_branch
        %161 = sbr.rel (%p158) target = $region28
      $region27: #{tpu_custom_call.1} parent=5 // pred_region
        %s162 = ssub.s32 %s17, 1
        %s163 = sand.u32 %s30, 1
        %s164 = scalar_lea.sflag [#allocation4], %s163
        %s165 = sand.u32 %s30, 1
        %s166 = smul.addr %s165, 32
        %s167 = scalar_lea.vmem [#allocation3], %s166
        // Predicated region
        $region29: #{tpu_custom_call.1} parent=27 // pred_check
          %p168 = pneg %p43
        $region30: #{tpu_custom_call.1} parent=27 // pred_check_branch
          %170 = sbr.rel (%p168) target = $region32
        $region31: #{tpu_custom_call.1} parent=27 // pred_region
          %171 = dma.done %s164, 512
        $region32: #{tpu_custom_call.1} parent=27 // pred_fallthru
          _
        %s172 = sand.u32 %s56, 1
        %s173 = scalar_lea.sflag [#allocation7], %s172
        %s174 = sand.u32 %s56, 1
        %s175 = smul.addr %s174, 8
        %s176 = scalar_lea.vmem [#allocation6], %s175
        // Predicated region
        $region33: #{tpu_custom_call.1} parent=27 // pred_check
          %p177 = pneg %p69
        $region34: #{tpu_custom_call.1} parent=27 // pred_check_branch
          %179 = sbr.rel (%p177) target = $region36
        $region35: #{tpu_custom_call.1} parent=27 // pred_region
          %180 = dma.done %s173, 128
        $region36: #{tpu_custom_call.1} parent=27 // pred_fallthru
          _
        %s181 = sand.u32 %s30, 1
        %s182 = scalar_lea.sflag [#allocation4], %s181
        %s183 = sand.u32 %s30, 1
        %s184 = smul.addr %s183, 32
        %s185 = scalar_lea.vmem [#allocation3], %s184
        %p186 = pneg %p43
        %p187 = pneg %p40
        %s188 = sand.u32 %s56, 1
        %s189 = scalar_lea.sflag [#allocation7], %s188
        %s190 = sand.u32 %s56, 1
        %s191 = smul.addr %s190, 8
        %s192 = scalar_lea.vmem [#allocation6], %s191
        %p193 = pneg %p69
        %p194 = pneg %p66
        %p195 = pneg %p95
        %p196 = pneg %p92
        %s197 = sand.u32 %s82, 1
        %s198 = scalar_lea.sflag [#allocation5], %s197
        %s199 = sand.u32 %s82, 1
        %s200 = smul.addr %s199, 32
        %s201 = scalar_lea.vmem [#allocation8], %s200
        %vm202 = vcmask 1040448
        %203 = vst.msk [vmem:[#allocation2] sm:$0x1] %vm202, 0.0
        %vm204 = vcmask 57344
        %205 = vst.msk [vmem:[#allocation2 + $0x8] sm:$0x1] %vm204, 0.0
        %206 = vst.msk [vmem:[#allocation2 + $0x20] sm:$0x1] %vm202, 0.0
        %207 = vst.msk [vmem:[#allocation2 + $0x28] sm:$0x1] %vm204, 0.0
        %208 = vst.msk [vmem:[#allocation2 + $0x40] sm:$0x1] %vm202, 0.0
        %209 = vst.msk [vmem:[#allocation2 + $0x48] sm:$0x1] %vm204, 0.0
        %210 = vst.msk [vmem:[#allocation2 + $0x60] sm:$0x1] %vm202, 0.0
        %211 = vst.msk [vmem:[#allocation2 + $0x68] sm:$0x1] %vm204, 0.0
        %212 = vst.msk [vmem:[#allocation2 + $0x11] sm:$0x1] %vm202, 0.0
        %213 = vst.msk [vmem:[#allocation2 + $0x19] sm:$0x1] %vm204, 0.0
        %214 = vst.msk [vmem:[#allocation2 + $0x31] sm:$0x1] %vm202, 0.0
        %215 = vst.msk [vmem:[#allocation2 + $0x39] sm:$0x1] %vm204, 0.0
        %216 = vst.msk [vmem:[#allocation2 + $0x51] sm:$0x1] %vm202, 0.0
        %217 = vst.msk [vmem:[#allocation2 + $0x59] sm:$0x1] %vm204, 0.0
        %218 = vst.msk [vmem:[#allocation2 + $0x71] sm:$0x1] %vm202, 0.0
        %219 = vst.msk [vmem:[#allocation2 + $0x79] sm:$0x1] %vm204, 0.0
        %vm220 = vcmask 64513
        %221 = vst.msk [vmem:[#allocation2] sm:$0xfe] %vm220, 0.0
        %222 = vst.msk [vmem:[#allocation2 + $0x10] sm:$0x1] %vm204, 0.0
        %223 = vst.msk [vmem:[#allocation2 + $0x20] sm:$0xfe] %vm220, 0.0
        %224 = vst.msk [vmem:[#allocation2 + $0x30] sm:$0x1] %vm204, 0.0
        %225 = vst.msk [vmem:[#allocation2 + $0x40] sm:$0xfe] %vm220, 0.0
        %226 = vst.msk [vmem:[#allocation2 + $0x50] sm:$0x1] %vm204, 0.0
        %227 = vst.msk [vmem:[#allocation2 + $0x60] sm:$0xfe] %vm220, 0.0
        %228 = vst.msk [vmem:[#allocation2 + $0x70] sm:$0x1] %vm204, 0.0
        %vm229 = vcmask 130113
        %230 = vst.msk [vmem:[#allocation2 + $0x8] sm:$0xfe] %vm229, 0.0
        %vm231 = vcmask 122944
        %232 = vst.msk [vmem:[#allocation2 + $0x18] sm:$0x1] %vm231, 0.0
        %233 = vst.msk [vmem:[#allocation2 + $0x28] sm:$0xfe] %vm229, 0.0
        %234 = vst.msk [vmem:[#allocation2 + $0x38] sm:$0x1] %vm231, 0.0
        %235 = vst.msk [vmem:[#allocation2 + $0x48] sm:$0xfe] %vm229, 0.0
        %236 = vst.msk [vmem:[#allocation2 + $0x58] sm:$0x1] %vm231, 0.0
        %237 = vst.msk [vmem:[#allocation2 + $0x68] sm:$0xfe] %vm229, 0.0
        %238 = vst.msk [vmem:[#allocation2 + $0x78] sm:$0x1] %vm231, 0.0
        %v239 = vld [vmem:[%s176] sm:$0x3]
        %v240 = vld [vmem:[%s176 + $0x2] sm:$0x3]
        %v241 = vld [vmem:[%s176 + $0x4] sm:$0x3]
        %v242 = vld [vmem:[%s176 + $0x6] sm:$0x3]
        %v243 = vunpack.c.0.s8 %v239
        %v244 = vunpack.c.0.s8 %v240
        %v245 = vunpack.c.0.s8 %v241
        %v246 = vunpack.c.0.s8 %v242
        %v247 = vcvt.s32.f32 %v243
        %v248 = vcvt.s32.f32 %v244
        %v249 = vcvt.s32.f32 %v245
        %v250 = vcvt.s32.f32 %v246
        %v251 = vlaneseq
        %v252 = vand.u32 %v251, 127
        %v253 = vand.u32 %v252, 7
        %v258 = vrot.slane %v247, 7
        %v259 = vrot.slane %v248, 7
        %v260 = vrot.slane %v249, 7
        %v261 = vrot.slane %v250, 7
        %262 = vrot.lane.b32.xlu0 %v258, 8
        %v263 = vpop.permute.xlu0 %262
        %264 = vrot.lane.b32.xlu0 %v259, 8
        %v265 = vpop.permute.xlu0 %264
        %266 = vrot.lane.b32.xlu0 %v260, 8
        %v267 = vpop.permute.xlu0 %266
        %268 = vrot.lane.b32.xlu0 %v261, 8
        %v269 = vpop.permute.xlu0 %268
        %vm274 = vcmask 1047617
        %275 = vst.msk [vmem:[#allocation2] sm:$0xfe] %vm274, %v263
        %276 = vst.msk [vmem:[#allocation2 + $0x8] sm:$0xfe] %vm220, %v263
        %277 = vst.msk [vmem:[#allocation2 + $0x10] sm:$0x1] %vm202, %v263
        %278 = vst.msk [vmem:[#allocation2 + $0x18] sm:$0x1] %vm204, %v263
        %279 = vst.msk [vmem:[#allocation2 + $0x20] sm:$0xfe] %vm274, %v265
        %280 = vst.msk [vmem:[#allocation2 + $0x28] sm:$0xfe] %vm220, %v265
        %281 = vst.msk [vmem:[#allocation2 + $0x30] sm:$0x1] %vm202, %v265
        %282 = vst.msk [vmem:[#allocation2 + $0x38] sm:$0x1] %vm204, %v265
        %283 = vst.msk [vmem:[#allocation2 + $0x40] sm:$0xfe] %vm274, %v267
        %284 = vst.msk [vmem:[#allocation2 + $0x48] sm:$0xfe] %vm220, %v267
        %285 = vst.msk [vmem:[#allocation2 + $0x50] sm:$0x1] %vm202, %v267
        %286 = vst.msk [vmem:[#allocation2 + $0x58] sm:$0x1] %vm204, %v267
        %287 = vst.msk [vmem:[#allocation2 + $0x60] sm:$0xfe] %vm274, %v269
        %288 = vst.msk [vmem:[#allocation2 + $0x68] sm:$0xfe] %vm220, %v269
        %289 = vst.msk [vmem:[#allocation2 + $0x70] sm:$0x1] %vm202, %v269
        %290 = vst.msk [vmem:[#allocation2 + $0x78] sm:$0x1] %vm204, %v269
        %v291 = vld [vmem:[#allocation2] sm:$0xfe]
        %v292 = vld [vmem:[#allocation2 + $0x8] sm:$0xfe]
        %v293 = vld [vmem:[#allocation2 + $0x10] sm:$0x1]
        %v294 = vld [vmem:[#allocation2 + $0x18] sm:$0x1]
        %v295 = vld [vmem:[#allocation2 + $0x20] sm:$0xfe]
        %v296 = vld [vmem:[#allocation2 + $0x28] sm:$0xfe]
        %v297 = vld [vmem:[#allocation2 + $0x30] sm:$0x1]
        %v298 = vld [vmem:[#allocation2 + $0x38] sm:$0x1]
        %v299 = vld [vmem:[#allocation2 + $0x40] sm:$0xfe]
        %v300 = vld [vmem:[#allocation2 + $0x48] sm:$0xfe]
        %v301 = vld [vmem:[#allocation2 + $0x50] sm:$0x1]
        %v302 = vld [vmem:[#allocation2 + $0x58] sm:$0x1]
        %v303 = vld [vmem:[#allocation2 + $0x60] sm:$0xfe]
        %v304 = vld [vmem:[#allocation2 + $0x68] sm:$0xfe]
        %v305 = vld [vmem:[#allocation2 + $0x70] sm:$0x1]
        %v306 = vld [vmem:[#allocation2 + $0x78] sm:$0x1]
        %v307 = vadd.s32 %v253, 4294967295
        %vm308 = vcmp.ge.s32.totalorder %v307, 0
        %vm309 = vcmp.lt.s32.totalorder %v307, 8
        %vm310 = vmand %vm308, %vm309
        %v311 = vsel %vm310, 1, 0
        %v312 = vcvt.s32.f32 %v311
        %314 = vrot.lane.b32.xlu0 %v312, 7
        %v315 = vpop.permute.xlu0 %314
        %v317 = vmul.f32 %v291, %v315
        %v318 = vmul.f32 %v292, %v315
        %v319 = vmul.f32 %v293, %v315
        %v320 = vmul.f32 %v294, %v315
        %v321 = vmul.f32 %v295, %v315
        %v322 = vmul.f32 %v296, %v315
        %v323 = vmul.f32 %v297, %v315
        %v324 = vmul.f32 %v298, %v315
        %v325 = vmul.f32 %v299, %v315
        %v326 = vmul.f32 %v300, %v315
        %v327 = vmul.f32 %v301, %v315
        %v328 = vmul.f32 %v302, %v315
        %v329 = vmul.f32 %v303, %v315
        %v330 = vmul.f32 %v304, %v315
        %v331 = vmul.f32 %v305, %v315
        %v332 = vmul.f32 %v306, %v315
        %vm349 = vcmask 1046528
        %v350 = vrot.slane %v317, 1
        %v351 = vrot.slane %v319, 1
        %v352 = vsel %vm349, %v350, %v351
        %v353 = vrot.slane %v318, 1
        %v354 = vrot.slane %v320, 1
        %v355 = vsel %vm349, %v353, %v354
        %v356 = vrot.slane %v321, 1
        %v357 = vrot.slane %v323, 1
        %v358 = vsel %vm349, %v356, %v357
        %v359 = vrot.slane %v322, 1
        %v360 = vrot.slane %v324, 1
        %v361 = vsel %vm349, %v359, %v360
        %v362 = vrot.slane %v325, 1
        %v363 = vrot.slane %v327, 1
        %v364 = vsel %vm349, %v362, %v363
        %v365 = vrot.slane %v326, 1
        %v366 = vrot.slane %v328, 1
        %v367 = vsel %vm349, %v365, %v366
        %v368 = vrot.slane %v329, 1
        %v369 = vrot.slane %v331, 1
        %v370 = vsel %vm349, %v368, %v369
        %v371 = vrot.slane %v330, 1
        %v372 = vrot.slane %v332, 1
        %v373 = vsel %vm349, %v371, %v372
        %374 = vrot.lane.b32.xlu0 %v352, 121
        %v375 = vpop.permute.xlu0 %374
        %376 = vrot.lane.b32.xlu0 %v355, 121
        %v377 = vpop.permute.xlu0 %376
        %378 = vrot.lane.b32.xlu0 %v358, 121
        %v379 = vpop.permute.xlu0 %378
        %380 = vrot.lane.b32.xlu0 %v361, 121
        %v381 = vpop.permute.xlu0 %380
        %382 = vrot.lane.b32.xlu0 %v364, 121
        %v383 = vpop.permute.xlu0 %382
        %384 = vrot.lane.b32.xlu0 %v367, 121
        %v385 = vpop.permute.xlu0 %384
        %386 = vrot.lane.b32.xlu0 %v370, 121
        %v387 = vpop.permute.xlu0 %386
        %388 = vrot.lane.b32.xlu0 %v373, 121
        %v389 = vpop.permute.xlu0 %388
        %vm390 = vcmask 990208
        %v391 = vsel %vm390, %v375, %v377
        %v392 = vsel %vm390, %v379, %v381
        %v393 = vsel %vm390, %v383, %v385
        %v394 = vsel %vm390, %v387, %v389
        %v399 = vmax.f32 %v247, %v391
        %v400 = vmax.f32 %v248, %v392
        %v401 = vmax.f32 %v249, %v393
        %v402 = vmax.f32 %v250, %v394
        %v403 = vadd.s32 %v253, 1
        %vm404 = vcmp.ge.s32.totalorder %v403, 0
        %vm405 = vcmp.lt.s32.totalorder %v403, 8
        %vm406 = vmand %vm404, %vm405
        %v407 = vsel %vm406, 1, 0
        %v408 = vcvt.s32.f32 %v407
        %410 = vrot.lane.b32.xlu0 %v408, 9
        %v411 = vpop.permute.xlu0 %410
        %v413 = vmul.f32 %v291, %v411
        %v414 = vmul.f32 %v292, %v411
        %v415 = vmul.f32 %v293, %v411
        %v416 = vmul.f32 %v294, %v411
        %v417 = vmul.f32 %v295, %v411
        %v418 = vmul.f32 %v296, %v411
        %v419 = vmul.f32 %v297, %v411
        %v420 = vmul.f32 %v298, %v411
        %v421 = vmul.f32 %v299, %v411
        %v422 = vmul.f32 %v300, %v411
        %v423 = vmul.f32 %v301, %v411
        %v424 = vmul.f32 %v302, %v411
        %v425 = vmul.f32 %v303, %v411
        %v426 = vmul.f32 %v304, %v411
        %v427 = vmul.f32 %v305, %v411
        %v428 = vmul.f32 %v306, %v411
        %v445 = vrot.slane %v413, 1
        %v446 = vrot.slane %v415, 1
        %v447 = vsel %vm349, %v445, %v446
        %v448 = vrot.slane %v414, 1
        %v449 = vrot.slane %v416, 1
        %v450 = vsel %vm349, %v448, %v449
        %v451 = vrot.slane %v417, 1
        %v452 = vrot.slane %v419, 1
        %v453 = vsel %vm349, %v451, %v452
        %v454 = vrot.slane %v418, 1
        %v455 = vrot.slane %v420, 1
        %v456 = vsel %vm349, %v454, %v455
        %v457 = vrot.slane %v421, 1
        %v458 = vrot.slane %v423, 1
        %v459 = vsel %vm349, %v457, %v458
        %v460 = vrot.slane %v422, 1
        %v461 = vrot.slane %v424, 1
        %v462 = vsel %vm349, %v460, %v461
        %v463 = vrot.slane %v425, 1
        %v464 = vrot.slane %v427, 1
        %v465 = vsel %vm349, %v463, %v464
        %v466 = vrot.slane %v426, 1
        %v467 = vrot.slane %v428, 1
        %v468 = vsel %vm349, %v466, %v467
        %469 = vrot.lane.b32.xlu0 %v447, 119
        %v470 = vpop.permute.xlu0 %469
        %471 = vrot.lane.b32.xlu0 %v450, 119
        %v472 = vpop.permute.xlu0 %471
        %473 = vrot.lane.b32.xlu0 %v453, 119
        %v474 = vpop.permute.xlu0 %473
        %475 = vrot.lane.b32.xlu0 %v456, 119
        %v476 = vpop.permute.xlu0 %475
        %477 = vrot.lane.b32.xlu0 %v459, 119
        %v478 = vpop.permute.xlu0 %477
        %479 = vrot.lane.b32.xlu0 %v462, 119
        %v480 = vpop.permute.xlu0 %479
        %481 = vrot.lane.b32.xlu0 %v465, 119
        %v482 = vpop.permute.xlu0 %481
        %483 = vrot.lane.b32.xlu0 %v468, 119
        %v484 = vpop.permute.xlu0 %483
        %vm485 = vcmask 973824
        %v486 = vsel %vm485, %v470, %v472
        %v487 = vsel %vm485, %v474, %v476
        %v488 = vsel %vm485, %v478, %v480
        %v489 = vsel %vm485, %v482, %v484
        %v494 = vmax.f32 %v399, %v486
        %v495 = vmax.f32 %v400, %v487
        %v496 = vmax.f32 %v401, %v488
        %v497 = vmax.f32 %v402, %v489
        %v502 = vrot.slane %v494, 7
        %v503 = vrot.slane %v495, 7
        %v504 = vrot.slane %v496, 7
        %v505 = vrot.slane %v497, 7
        %506 = vrot.lane.b32.xlu0 %v502, 8
        %v507 = vpop.permute.xlu0 %506
        %508 = vrot.lane.b32.xlu0 %v503, 8
        %v509 = vpop.permute.xlu0 %508
        %510 = vrot.lane.b32.xlu0 %v504, 8
        %v511 = vpop.permute.xlu0 %510
        %512 = vrot.lane.b32.xlu0 %v505, 8
        %v513 = vpop.permute.xlu0 %512
        %518 = vst.msk [vmem:[#allocation2] sm:$0xfe] %vm274, %v507
        %519 = vst.msk [vmem:[#allocation2 + $0x8] sm:$0xfe] %vm220, %v507
        %520 = vst.msk [vmem:[#allocation2 + $0x10] sm:$0x1] %vm202, %v507
        %521 = vst.msk [vmem:[#allocation2 + $0x18] sm:$0x1] %vm204, %v507
        %522 = vst.msk [vmem:[#allocation2 + $0x20] sm:$0xfe] %vm274, %v509
        %523 = vst.msk [vmem:[#allocation2 + $0x28] sm:$0xfe] %vm220, %v509
        %524 = vst.msk [vmem:[#allocation2 + $0x30] sm:$0x1] %vm202, %v509
        %525 = vst.msk [vmem:[#allocation2 + $0x38] sm:$0x1] %vm204, %v509
        %526 = vst.msk [vmem:[#allocation2 + $0x40] sm:$0xfe] %vm274, %v511
        %527 = vst.msk [vmem:[#allocation2 + $0x48] sm:$0xfe] %vm220, %v511
        %528 = vst.msk [vmem:[#allocation2 + $0x50] sm:$0x1] %vm202, %v511
        %529 = vst.msk [vmem:[#allocation2 + $0x58] sm:$0x1] %vm204, %v511
        %530 = vst.msk [vmem:[#allocation2 + $0x60] sm:$0xfe] %vm274, %v513
        %531 = vst.msk [vmem:[#allocation2 + $0x68] sm:$0xfe] %vm220, %v513
        %532 = vst.msk [vmem:[#allocation2 + $0x70] sm:$0x1] %vm202, %v513
        %533 = vst.msk [vmem:[#allocation2 + $0x78] sm:$0x1] %vm204, %v513
        %v534 = vld [vmem:[#allocation2] sm:$0xfe]
        %v535 = vld [vmem:[#allocation2 + $0x10] sm:$0x1]
        %v536 = vld [vmem:[#allocation2 + $0x20] sm:$0xfe]
        %v537 = vld [vmem:[#allocation2 + $0x30] sm:$0x1]
        %v538 = vld [vmem:[#allocation2 + $0x40] sm:$0xfe]
        %v539 = vld [vmem:[#allocation2 + $0x50] sm:$0x1]
        %v540 = vld [vmem:[#allocation2 + $0x60] sm:$0xfe]
        %v541 = vld [vmem:[#allocation2 + $0x70] sm:$0x1]
        %v550 = vrot.slane %v534, 1
        %v551 = vrot.slane %v535, 1
        %v552 = vsel %vm349, %v550, %v551
        %v553 = vrot.slane %v536, 1
        %v554 = vrot.slane %v537, 1
        %v555 = vsel %vm349, %v553, %v554
        %v556 = vrot.slane %v538, 1
        %v557 = vrot.slane %v539, 1
        %v558 = vsel %vm349, %v556, %v557
        %v559 = vrot.slane %v540, 1
        %v560 = vrot.slane %v541, 1
        %v561 = vsel %vm349, %v559, %v560
        %v566 = vmax.f32 %v494, %v552
        %v567 = vmax.f32 %v495, %v555
        %v568 = vmax.f32 %v496, %v558
        %v569 = vmax.f32 %v497, %v561
        %v570 = vld [vmem:[#allocation2 + $0x8] sm:$0xfe]
        %v571 = vld [vmem:[#allocation2 + $0x18] sm:$0x1]
        %v572 = vld [vmem:[#allocation2 + $0x28] sm:$0xfe]
        %v573 = vld [vmem:[#allocation2 + $0x38] sm:$0x1]
        %v574 = vld [vmem:[#allocation2 + $0x48] sm:$0xfe]
        %v575 = vld [vmem:[#allocation2 + $0x58] sm:$0x1]
        %v576 = vld [vmem:[#allocation2 + $0x68] sm:$0xfe]
        %v577 = vld [vmem:[#allocation2 + $0x78] sm:$0x1]
        %v586 = vrot.slane %v570, 1
        %v587 = vrot.slane %v571, 1
        %v588 = vsel %vm349, %v586, %v587
        %v589 = vrot.slane %v572, 1
        %v590 = vrot.slane %v573, 1
        %v591 = vsel %vm349, %v589, %v590
        %v592 = vrot.slane %v574, 1
        %v593 = vrot.slane %v575, 1
        %v594 = vsel %vm349, %v592, %v593
        %v595 = vrot.slane %v576, 1
        %v596 = vrot.slane %v577, 1
        %v597 = vsel %vm349, %v595, %v596
        %598 = vrot.lane.b32.xlu0 %v552, 112
        %v599 = vpop.permute.xlu0 %598
        %600 = vrot.lane.b32.xlu0 %v588, 112
        %v601 = vpop.permute.xlu0 %600
        %602 = vrot.lane.b32.xlu0 %v555, 112
        %v603 = vpop.permute.xlu0 %602
        %604 = vrot.lane.b32.xlu0 %v591, 112
        %v605 = vpop.permute.xlu0 %604
        %606 = vrot.lane.b32.xlu0 %v558, 112
        %v607 = vpop.permute.xlu0 %606
        %608 = vrot.lane.b32.xlu0 %v594, 112
        %v609 = vpop.permute.xlu0 %608
        %610 = vrot.lane.b32.xlu0 %v561, 112
        %v611 = vpop.permute.xlu0 %610
        %612 = vrot.lane.b32.xlu0 %v597, 112
        %v613 = vpop.permute.xlu0 %612
        %vm614 = vcmask 916480
        %v615 = vsel %vm614, %v599, %v601
        %v616 = vsel %vm614, %v603, %v605
        %v617 = vsel %vm614, %v607, %v609
        %v618 = vsel %vm614, %v611, %v613
        %v623 = vmax.f32 %v566, %v615
        %v624 = vmax.f32 %v567, %v616
        %v625 = vmax.f32 %v568, %v617
        %v626 = vmax.f32 %v569, %v618
        %v631 = vrot.slane %v623, 7
        %v632 = vrot.slane %v624, 7
        %v633 = vrot.slane %v625, 7
        %v634 = vrot.slane %v626, 7
        %635 = vrot.lane.b32.xlu0 %v631, 8
        %v636 = vpop.permute.xlu0 %635
        %637 = vrot.lane.b32.xlu0 %v632, 8
        %v638 = vpop.permute.xlu0 %637
        %639 = vrot.lane.b32.xlu0 %v633, 8
        %v640 = vpop.permute.xlu0 %639
        %641 = vrot.lane.b32.xlu0 %v634, 8
        %v642 = vpop.permute.xlu0 %641
        %647 = vst.msk [vmem:[#allocation2] sm:$0xfe] %vm274, %v636
        %648 = vst.msk [vmem:[#allocation2 + $0x8] sm:$0xfe] %vm220, %v636
        %649 = vst.msk [vmem:[#allocation2 + $0x10] sm:$0x1] %vm202, %v636
        %650 = vst.msk [vmem:[#allocation2 + $0x18] sm:$0x1] %vm204, %v636
        %651 = vst.msk [vmem:[#allocation2 + $0x20] sm:$0xfe] %vm274, %v638
        %652 = vst.msk [vmem:[#allocation2 + $0x28] sm:$0xfe] %vm220, %v638
        %653 = vst.msk [vmem:[#allocation2 + $0x30] sm:$0x1] %vm202, %v638
        %654 = vst.msk [vmem:[#allocation2 + $0x38] sm:$0x1] %vm204, %v638
        %655 = vst.msk [vmem:[#allocation2 + $0x40] sm:$0xfe] %vm274, %v640
        %656 = vst.msk [vmem:[#allocation2 + $0x48] sm:$0xfe] %vm220, %v640
        %657 = vst.msk [vmem:[#allocation2 + $0x50] sm:$0x1] %vm202, %v640
        %658 = vst.msk [vmem:[#allocation2 + $0x58] sm:$0x1] %vm204, %v640
        %659 = vst.msk [vmem:[#allocation2 + $0x60] sm:$0xfe] %vm274, %v642
        %660 = vst.msk [vmem:[#allocation2 + $0x68] sm:$0xfe] %vm220, %v642
        %661 = vst.msk [vmem:[#allocation2 + $0x70] sm:$0x1] %vm202, %v642
        %662 = vst.msk [vmem:[#allocation2 + $0x78] sm:$0x1] %vm204, %v642
        %v663 = vld [vmem:[#allocation2] sm:$0xff]
        %v664 = vld [vmem:[#allocation2 + $0x8] sm:$0xff]
        %v665 = vld [vmem:[#allocation2 + $0x20] sm:$0xff]
        %v666 = vld [vmem:[#allocation2 + $0x28] sm:$0xff]
        %v667 = vld [vmem:[#allocation2 + $0x40] sm:$0xff]
        %v668 = vld [vmem:[#allocation2 + $0x48] sm:$0xff]
        %v669 = vld [vmem:[#allocation2 + $0x60] sm:$0xff]
        %v670 = vld [vmem:[#allocation2 + $0x68] sm:$0xff]
        %679 = vrot.lane.b32.xlu0 %v663, 120
        %v680 = vpop.permute.xlu0 %679
        %681 = vrot.lane.b32.xlu0 %v664, 120
        %v682 = vpop.permute.xlu0 %681
        %683 = vrot.lane.b32.xlu0 %v665, 120
        %v684 = vpop.permute.xlu0 %683
        %685 = vrot.lane.b32.xlu0 %v666, 120
        %v686 = vpop.permute.xlu0 %685
        %687 = vrot.lane.b32.xlu0 %v667, 120
        %v688 = vpop.permute.xlu0 %687
        %689 = vrot.lane.b32.xlu0 %v668, 120
        %v690 = vpop.permute.xlu0 %689
        %691 = vrot.lane.b32.xlu0 %v669, 120
        %v692 = vpop.permute.xlu0 %691
        %693 = vrot.lane.b32.xlu0 %v670, 120
        %v694 = vpop.permute.xlu0 %693
        %vm695 = vcmask 982016
        %v696 = vsel %vm695, %v680, %v682
        %v697 = vsel %vm695, %v684, %v686
        %v698 = vsel %vm695, %v688, %v690
        %v699 = vsel %vm695, %v692, %v694
        %v704 = vmax.f32 %v623, %v696
        %v705 = vmax.f32 %v624, %v697
        %v706 = vmax.f32 %v625, %v698
        %v707 = vmax.f32 %v626, %v699
        %v708 = vld [vmem:[#allocation2] sm:$0xfc]
        %v709 = vld [vmem:[#allocation2 + $0x8] sm:$0xfc]
        %v710 = vld [vmem:[#allocation2 + $0x10] sm:$0x3]
        %v711 = vld [vmem:[#allocation2 + $0x18] sm:$0x3]
        %v712 = vld [vmem:[#allocation2 + $0x20] sm:$0xfc]
        %v713 = vld [vmem:[#allocation2 + $0x28] sm:$0xfc]
        %v714 = vld [vmem:[#allocation2 + $0x30] sm:$0x3]
        %v715 = vld [vmem:[#allocation2 + $0x38] sm:$0x3]
        %v716 = vld [vmem:[#allocation2 + $0x40] sm:$0xfc]
        %v717 = vld [vmem:[#allocation2 + $0x48] sm:$0xfc]
        %v718 = vld [vmem:[#allocation2 + $0x50] sm:$0x3]
        %v719 = vld [vmem:[#allocation2 + $0x58] sm:$0x3]
        %v720 = vld [vmem:[#allocation2 + $0x60] sm:$0xfc]
        %v721 = vld [vmem:[#allocation2 + $0x68] sm:$0xfc]
        %v722 = vld [vmem:[#allocation2 + $0x70] sm:$0x3]
        %v723 = vld [vmem:[#allocation2 + $0x78] sm:$0x3]
        %vm740 = vcmask 1045504
        %v741 = vrot.slane %v708, 2
        %v742 = vrot.slane %v710, 2
        %v743 = vsel %vm740, %v741, %v742
        %v744 = vrot.slane %v709, 2
        %v745 = vrot.slane %v711, 2
        %v746 = vsel %vm740, %v744, %v745
        %v747 = vrot.slane %v712, 2
        %v748 = vrot.slane %v714, 2
        %v749 = vsel %vm740, %v747, %v748
        %v750 = vrot.slane %v713, 2
        %v751 = vrot.slane %v715, 2
        %v752 = vsel %vm740, %v750, %v751
        %v753 = vrot.slane %v716, 2
        %v754 = vrot.slane %v718, 2
        %v755 = vsel %vm740, %v753, %v754
        %v756 = vrot.slane %v717, 2
        %v757 = vrot.slane %v719, 2
        %v758 = vsel %vm740, %v756, %v757
        %v759 = vrot.slane %v720, 2
        %v760 = vrot.slane %v722, 2
        %v761 = vsel %vm740, %v759, %v760
        %v762 = vrot.slane %v721, 2
        %v763 = vrot.slane %v723, 2
        %v764 = vsel %vm740, %v762, %v763
        %765 = vrot.lane.b32.xlu0 %v743, 120
        %v766 = vpop.permute.xlu0 %765
        %767 = vrot.lane.b32.xlu0 %v746, 120
        %v768 = vpop.permute.xlu0 %767
        %769 = vrot.lane.b32.xlu0 %v749, 120
        %v770 = vpop.permute.xlu0 %769
        %771 = vrot.lane.b32.xlu0 %v752, 120
        %v772 = vpop.permute.xlu0 %771
        %773 = vrot.lane.b32.xlu0 %v755, 120
        %v774 = vpop.permute.xlu0 %773
        %775 = vrot.lane.b32.xlu0 %v758, 120
        %v776 = vpop.permute.xlu0 %775
        %777 = vrot.lane.b32.xlu0 %v761, 120
        %v778 = vpop.permute.xlu0 %777
        %779 = vrot.lane.b32.xlu0 %v764, 120
        %v780 = vpop.permute.xlu0 %779
        %v781 = vsel %vm695, %v766, %v768
        %v782 = vsel %vm695, %v770, %v772
        %v783 = vsel %vm695, %v774, %v776
        %v784 = vsel %vm695, %v778, %v780
        %v789 = vmax.f32 %v704, %v781
        %v790 = vmax.f32 %v705, %v782
        %v791 = vmax.f32 %v706, %v783
        %v792 = vmax.f32 %v707, %v784
        %v793 = vsub.f32 1.0, %v789
        %v794 = vsub.f32 1.0, %v790
        %v795 = vsub.f32 1.0, %v791
        %v796 = vsub.f32 1.0, %v792
        %v797 = vadd.f32 %v793, %v794
        %v798 = vadd.f32 %v797, %v795
        %v799 = vadd.f32 %v798, %v796
        %800 = vadd.xlane.f32.xlu0 %v799
        %v801 = vpop.xlane.xlu0 %800
        %v802 = vrot.slane %v801, 4
        %v803 = vadd.f32 %v801, %v802
        %v804 = vrot.slane %v803, 2
        %v805 = vadd.f32 %v803, %v804
        %v806 = vrot.slane %v805, 1
        %v807 = vadd.f32 %v805, %v806
        %s808 = vtos %v807
        %v809 = vstv %s808
        %v810 = vadd.f32 %v809, 0.0
        %v811 = vrcp.pop %v810
        %v812 = vmul.f32 %v810, %v811
        %v813 = vsub.f32 2.0, %v812
        %v814 = vmul.f32 %v811, %v813
        %v815 = vmul.f32 %v810, %v814
        %v816 = vsub.f32 2.0, %v815
        %v817 = vmul.f32 %v814, %v816
        %v818 = vadd.f32 %v817, 0.0
        %s819 = vtos %v818
        %s820 = smul.f32 %s819, 4096.0
        %v821 = vld [vmem:[%s167] sm:$0xff]
        %v822 = vld [vmem:[%s167 + $0x8] sm:$0xff]
        %v823 = vld [vmem:[%s167 + $0x10] sm:$0xff]
        %v824 = vld [vmem:[%s167 + $0x18] sm:$0xff]
        %v825 = vmul.f32 %v821, %v793
        %v826 = vmul.f32 %v822, %v794
        %v827 = vmul.f32 %v823, %v795
        %v828 = vmul.f32 %v824, %v796
        %v829 = vstv %s820
        %v830 = vmul.f32 %v825, %v829
        %v831 = vmul.f32 %v826, %v829
        %v832 = vmul.f32 %v827, %v829
        %v833 = vmul.f32 %v828, %v829
        %834 = vst [vmem:[%s201] sm:$0xff] %v830
        %835 = vst [vmem:[%s201 + $0x8] sm:$0xff] %v831
        %836 = vst [vmem:[%s201 + $0x10] sm:$0xff] %v832
        %837 = vst [vmem:[%s201 + $0x18] sm:$0xff] %v833
        %s838 = sand.u32 %s82, 1
        %s839 = scalar_lea.sflag [#allocation5], %s838
        %s840 = sand.u32 %s82, 1
        %s841 = smul.addr %s840, 32
        %s842 = scalar_lea.vmem [#allocation8], %s841
        // Predicated region
        $region37: #{tpu_custom_call.1} parent=27 // pred_check
          %p843 = pneg %p92
        $region38: #{tpu_custom_call.1} parent=27 // pred_check_branch
          %845 = sbr.rel (%p843) target = $region40
        $region39: #{tpu_custom_call.1} parent=27 // pred_region
          %s847 = ssub.s32 512, 512
          %848 = vsyncadd %s839, %s847
          %s849 = smul.addr %s22, 4
          %s850 = smul.addr %s849, 128
          %s851 = scalar_lea.hbm %s2, %s850
          %s852 = sshll.u32 %s842, 4
          %s853 = int_to_ptr.vmem [resolvable:$true] %s852
          %858 = dma.vmem_to_hbm [thread:$0]  %s853, 512, %s851, %s839, 128, 128, 8
        $region40: #{tpu_custom_call.1} parent=27 // pred_fallthru
          _
      $region28: #{tpu_custom_call.1} parent=5 // pred_fallthru
        _
      %p859 = scmp.le.s32.totalorder 2, %s17
      // Predicated region
      $region41: #{tpu_custom_call.1} parent=5 // pred_check
        %p860 = pneg %p859
      $region42: #{tpu_custom_call.1} parent=5 // pred_check_branch
        %862 = sbr.rel (%p860) target = $region44
      $region43: #{tpu_custom_call.1} parent=5 // pred_region
        %s863 = ssub.s32 %s17, 2
        // Predicated region
        $region45: #{tpu_custom_call.1} parent=43 // pred_check
          %p864 = pneg %p98
        $region46: #{tpu_custom_call.1} parent=43 // pred_check_branch
          %866 = sbr.rel (%p864) target = $region48
        $region47: #{tpu_custom_call.1} parent=43 // pred_region
          %s867 = sand.u32 %s83, 1
          %s868 = scalar_lea.sflag [#allocation5], %s867
          %s869 = sand.u32 %s83, 1
          %s870 = smul.addr %s869, 32
          %s871 = scalar_lea.vmem [#allocation8], %s870
          %872 = dma.done %s868, 512
        $region48: #{tpu_custom_call.1} parent=43 // pred_fallthru
          _
      $region44: #{tpu_custom_call.1} parent=5 // pred_fallthru
        _
    $region6: #{tpu_custom_call.1} parent=1 // loop_footer
      %s21 = sadd.s32 1, %s17
    $region7: #{tpu_custom_call.1} parent=1 // loop_footer_branch
      %16 = sbr.rel target = $region3
    $region8: #{tpu_custom_call.1} parent=1 // loop_exit
      _
    %873 = vsyncpa [#allocation4], 1
    %s874 = scalar_lea.sflag [#allocation4], 1
    %875 = vsyncpa %s874, 1
    %876 = vsyncpa [#allocation7], 1
    %s877 = scalar_lea.sflag [#allocation7], 1
    %878 = vsyncpa %s877, 1
    %879 = vsyncpa [#allocation5], 1
    %s880 = scalar_lea.sflag [#allocation5], 1
    %881 = vsyncpa %s880, 1

</llo_original>
